<compile_context>
chip_gen: v6e
topology: v6e:2x2x1
jax: 0.10.0
libtpu: 0.0.40
codegen_flags: <defaults>
</compile_context>

<pallas_src>
import functools

import jax
import jax.numpy as jnp
import numpy as np
from jax.experimental import pallas as pl
from jax.experimental.pallas import tpu as pltpu


def _choose_hw_tile(hw, cap=8192):
    """Largest multiple-of-128 divisor of hw (capped); fall back to full hw."""
    if hw % 128 != 0:
        return hw
    t = (min(cap, hw) // 128) * 128
    while hw % t != 0:
        t -= 128
    return t


def _make_dice_ct_partial_kernel(C):
    """Per-(batch, hw-tile) kernel producing per-channel partial sums."""

    def kernel(pred_ref, tgt_ref, ct_ref,
               num_out, psq_out, cnt_out, abs_out,
               acc_num, acc_psq, acc_cnt, acc_abs):
        t = pl.program_id(1)

        @pl.when(t == 0)
        def _():
            acc_num[...] = jnp.zeros_like(acc_num)
            acc_psq[...] = jnp.zeros_like(acc_psq)
            acc_cnt[...] = jnp.zeros_like(acc_cnt)
            acc_abs[...] = jnp.zeros_like(acc_abs)

        pred = pred_ref[0].astype(jnp.float32)            # (C, TILE) logits
        tgt = tgt_ref[0].astype(jnp.int32)                # (1, TILE) labels
        abs_ct = jnp.abs(ct_ref[0].astype(jnp.float32))   # (1, TILE)

        # Channel softmax over the sublane (C) axis: one exact reciprocal of
        # the denominator + per-channel multiplies (no C full-tile divides).
        m = jnp.max(pred, axis=0, keepdims=True)          # (1, TILE)
        e = jnp.exp(pred - m)                             # (C, TILE)
        inv = pl.reciprocal(jnp.sum(e, axis=0, keepdims=True), approx=False)
        p = e * inv                                       # (C, TILE) softmax

        # One-hot of target against every channel index (background channel 0
        # is free due to sublane padding; dropped later in the wrapper).
        chan_ids = jax.lax.broadcasted_iota(jnp.int32, (C, 1), 0)
        tk = (tgt == chan_ids).astype(jnp.float32)        # (C, TILE)

        # Lane-resident accumulation (pure VPU adds); cross-lane reduce deferred.
        acc_num[...] += p * tk
        acc_psq[...] += p * p
        acc_cnt[...] += tk                                # tk*tk == tk
        acc_abs[...] += abs_ct * jnp.abs(p - tk)          # == |p*ct - tk*ct|

        @pl.when(t == pl.num_programs(1) - 1)
        def _():
            num_out[...] = jnp.sum(acc_num[...], axis=-1, keepdims=True)[None]
            psq_out[...] = jnp.sum(acc_psq[...], axis=-1, keepdims=True)[None]
            cnt_out[...] = jnp.sum(acc_cnt[...], axis=-1, keepdims=True)[None]
            abs_out[...] = jnp.sum(acc_abs[...], axis=-1, keepdims=True)[None]

    return kernel


@functools.partial(jax.jit, static_argnames=("num_organ", "imsize"))
def dice_ct_loss(pred_stage1, target, ct, *, num_organ, imsize):
    """Pallas implementation of DiceCT.forward. Returns a scalar f32 loss.

    pred_stage1: (B, num_organ+1, imsize, imsize) logits
    target:      (B, imsize, imsize) integer labels in [0, num_organ]
    ct:          (B, imsize, imsize) CT image
    """
    B, C, H, W = pred_stage1.shape
    assert C == num_organ + 1 and H == imsize and W == imsize
    HW = H * W
    tile = _choose_hw_tile(HW)
    n_hw = HW // tile

    pred = pred_stage1.reshape(B, C, HW)                  # free reshape, no transpose
    tgt = target.reshape(B, 1, HW).astype(jnp.int8)       # small-dtype side input
    ct_f = ct.reshape(B, 1, HW).astype(jnp.float32)

    part_shape = jax.ShapeDtypeStruct((B, C, 1), jnp.float32)
    part_spec = pl.BlockSpec((1, C, 1), lambda b, t: (b, 0, 0))

    num_s, psq_s, cnt_s, abs_s = pl.pallas_call(
        _make_dice_ct_partial_kernel(C),
        out_shape=(part_shape,) * 4,
        grid_spec=pltpu.PrefetchScalarGridSpec(
            num_scalar_prefetch=0,
            grid=(B, n_hw),
            in_specs=[
                pl.BlockSpec((1, C, tile), lambda b, t: (b, 0, t)),
                pl.BlockSpec((1, 1, tile), lambda b, t: (b, 0, t)),
                pl.BlockSpec((1, 1, tile), lambda b, t: (b, 0, t)),
            ],
            out_specs=[part_spec] * 4,
            scratch_shapes=[pltpu.VMEM((C, tile), jnp.float32)] * 4,
        ),
        compiler_params=pltpu.CompilerParams(
            dimension_semantics=("parallel", "arbitrary")),
    )(pred, tgt, ct_f)

    # Tiny O(B * num_organ) final combine; kept in the JAX wrapper so the batch
    # grid axis can stay "parallel" across TensorCores.
    num = num_s[:, 1:, 0]      # (B, num_organ) -- drop background channel
    psq = psq_s[:, 1:, 0]
    cnt = cnt_s[:, 1:, 0]
    absd = abs_s[:, 1:, 0]

    dice = jnp.sum(2.0 * num / (psq + cnt + 1e-5), axis=1)          # (B,)
    ct_weights = jnp.sum(absd) / jnp.float32(B * HW)                # scalar
    dice = dice * ct_weights / jnp.float32(num_organ)
    return (1.0 - jnp.mean(dice)).astype(jnp.float32)


def dice_ct_ref(pred_stage1, target, ct, num_organ):
    """Pure-JAX reference mirroring the PyTorch forward."""
    p = jax.nn.softmax(pred_stage1.astype(jnp.float32), axis=1)
    dice = jnp.zeros((pred_stage1.shape[0],), jnp.float32)
    ct_weights = jnp.float32(0.0)
    for k in range(1, num_organ + 1):
        pk = p[:, k, :, :]
        tk = (target == k).astype(jnp.float32)
        dice = dice + 2.0 * jnp.sum(pk * tk, axis=(1, 2)) / (
            jnp.sum(pk * pk, axis=(1, 2)) + jnp.sum(tk * tk, axis=(1, 2)) + 1e-5)
        ct_weights = ct_weights + jnp.mean(jnp.abs(pk * ct - tk * ct))
    dice = dice * ct_weights / num_organ
    return 1.0 - jnp.mean(dice)


if __name__ == "__main__":
    num_organ = 4
    imsize = 16
    B = 2
    C = num_organ + 1

    key = jax.random.PRNGKey(0)
    k1, k2, k3 = jax.random.split(key, 3)
    pred = jax.random.normal(k1, (B, C, imsize, imsize), dtype=jnp.float32)
    target = jax.random.randint(k2, (B, imsize, imsize), 0, num_organ + 1,
                                dtype=jnp.int32)
    ct = jax.random.normal(k3, (B, imsize, imsize), dtype=jnp.float32)

    loss = dice_ct_loss(pred, target, ct, num_organ=num_organ, imsize=imsize)
    loss = jax.block_until_ready(loss)

    ref = jax.block_until_ready(dice_ct_ref(pred, target, ct, num_organ))
    np.testing.assert_allclose(np.asarray(loss), np.asarray(ref),
                               rtol=1e-5, atol=1e-5)

    print("KERNEL_OK")
</pallas_src>

<mosaic_0001>
module attributes {stable_mosaic.version = 11 : i64} {
  func.func @kernel(%arg0: i32, %arg1: i32, %arg2: memref<1x5x256xf32, #tpu.memory_space<vmem>>, %arg3: memref<1x1x256xi8, #tpu.memory_space<vmem>>, %arg4: memref<1x1x256xf32, #tpu.memory_space<vmem>>, %arg5: memref<1x5x1xf32, #tpu.memory_space<vmem>>, %arg6: memref<1x5x1xf32, #tpu.memory_space<vmem>>, %arg7: memref<1x5x1xf32, #tpu.memory_space<vmem>>, %arg8: memref<1x5x1xf32, #tpu.memory_space<vmem>>, %arg9: memref<5x256xf32, #tpu.memory_space<vmem>>, %arg10: memref<5x256xf32, #tpu.memory_space<vmem>>, %arg11: memref<5x256xf32, #tpu.memory_space<vmem>>, %arg12: memref<5x256xf32, #tpu.memory_space<vmem>>) attributes {dimension_semantics = [#tpu.dimension_semantics<parallel>, #tpu.dimension_semantics<arbitrary>], iteration_bounds = array<i64: 2, 1>, scalar_prefetch = 0 : i64, scratch_operands = 4 : i64, tpu.core_type = #tpu.core_type<tc>, window_params = [{transform_indices = @transform_0, window_bounds = array<i64: 1, 5, 256>}, {transform_indices = @transform_1, window_bounds = array<i64: 1, 1, 256>}, {transform_indices = @transform_2, window_bounds = array<i64: 1, 1, 256>}, {transform_indices = @transform_3, window_bounds = array<i64: 1, 5, 1>}, {transform_indices = @transform_4, window_bounds = array<i64: 1, 5, 1>}, {transform_indices = @transform_5, window_bounds = array<i64: 1, 5, 1>}, {transform_indices = @transform_6, window_bounds = array<i64: 1, 5, 1>}]} {
    %c0_i32 = arith.constant 0 : i32
    %0 = arith.cmpi eq, %arg1, %c0_i32 : i32
    %1 = arith.extui %0 : i1 to i32
    %c0_i32_0 = arith.constant 0 : i32
    %2 = arith.cmpi ne, %1, %c0_i32_0 : i32
    scf.if %2 {
      %cst_28 = arith.constant 0.000000e+00 : f32
      %48 = vector.broadcast %cst_28 : f32 to vector<5x256xf32>
      %c0_29 = arith.constant 0 : index
      %c0_30 = arith.constant 0 : index
      %49 = vector.load %arg9[%c0_29, %c0_30] : memref<5x256xf32, #tpu.memory_space<vmem>>, vector<5x256xf32>
      tpu.vector_store %arg9[%c0_29, %c0_30], %48 {strides = array<i32>} : memref<5x256xf32, #tpu.memory_space<vmem>>, vector<5x256xf32>,
      %cst_31 = arith.constant 0.000000e+00 : f32
      %50 = vector.broadcast %cst_31 : f32 to vector<5x256xf32>
      %c0_32 = arith.constant 0 : index
      %c0_33 = arith.constant 0 : index
      %51 = vector.load %arg10[%c0_32, %c0_33] : memref<5x256xf32, #tpu.memory_space<vmem>>, vector<5x256xf32>
      tpu.vector_store %arg10[%c0_32, %c0_33], %50 {strides = array<i32>} : memref<5x256xf32, #tpu.memory_space<vmem>>, vector<5x256xf32>,
      %cst_34 = arith.constant 0.000000e+00 : f32
      %52 = vector.broadcast %cst_34 : f32 to vector<5x256xf32>
      %c0_35 = arith.constant 0 : index
      %c0_36 = arith.constant 0 : index
      %53 = vector.load %arg11[%c0_35, %c0_36] : memref<5x256xf32, #tpu.memory_space<vmem>>, vector<5x256xf32>
      tpu.vector_store %arg11[%c0_35, %c0_36], %52 {strides = array<i32>} : memref<5x256xf32, #tpu.memory_space<vmem>>, vector<5x256xf32>,
      %cst_37 = arith.constant 0.000000e+00 : f32
      %54 = vector.broadcast %cst_37 : f32 to vector<5x256xf32>
      %c0_38 = arith.constant 0 : index
      %c0_39 = arith.constant 0 : index
      %55 = vector.load %arg12[%c0_38, %c0_39] : memref<5x256xf32, #tpu.memory_space<vmem>>, vector<5x256xf32>
      tpu.vector_store %arg12[%c0_38, %c0_39], %54 {strides = array<i32>} : memref<5x256xf32, #tpu.memory_space<vmem>>, vector<5x256xf32>,
    } else {
    }
    %c0 = arith.constant 0 : index
    %c0_1 = arith.constant 0 : index
    %c0_2 = arith.constant 0 : index
    %3 = vector.load %arg2[%c0, %c0_1, %c0_2] : memref<1x5x256xf32, #tpu.memory_space<vmem>>, vector<1x5x256xf32>
    %4 = vector.shape_cast %3 : vector<1x5x256xf32> to vector<5x256xf32>
    %c0_3 = arith.constant 0 : index
    %c0_4 = arith.constant 0 : index
    %c0_5 = arith.constant 0 : index
    %5 = vector.load %arg3[%c0_3, %c0_4, %c0_5] : memref<1x1x256xi8, #tpu.memory_space<vmem>>, vector<1x1x256xi8>
    %6 = vector.shape_cast %5 : vector<1x1x256xi8> to vector<1x256xi8>
    %7 = arith.extsi %6 : vector<1x256xi8> to vector<1x256xi32>
    %c0_6 = arith.constant 0 : index
    %c0_7 = arith.constant 0 : index
    %c0_8 = arith.constant 0 : index
    %8 = vector.load %arg4[%c0_6, %c0_7, %c0_8] : memref<1x1x256xf32, #tpu.memory_space<vmem>>, vector<1x1x256xf32>
    %9 = vector.shape_cast %8 : vector<1x1x256xf32> to vector<1x256xf32>
    %10 = math.absf %9 : vector<1x256xf32>
    %cst = arith.constant dense<0xFF800000> : vector<256xf32>
    %11 = vector.multi_reduction <maximumf>, %4, %cst [0] : vector<5x256xf32> to vector<256xf32>
    %12 = vector.shape_cast %11 : vector<256xf32> to vector<1x256xf32>
    %13 = vector.broadcast %12 : vector<1x256xf32> to vector<5x256xf32>
    %14 = arith.subf %4, %13 : vector<5x256xf32>
    %15 = math.exp %14 : vector<5x256xf32>
    %cst_9 = arith.constant dense<0.000000e+00> : vector<256xf32>
    %16 = vector.multi_reduction <add>, %15, %cst_9 [0] : vector<5x256xf32> to vector<256xf32>
    %17 = vector.shape_cast %16 : vector<256xf32> to vector<1x256xf32>
    %18 = tpu.reciprocal %17 : vector<1x256xf32> -> vector<1x256xf32>
    %19 = vector.broadcast %18 : vector<1x256xf32> to vector<5x256xf32>
    %20 = arith.mulf %15, %19 : vector<5x256xf32>
    %21 = tpu.iota {dimensions = array<i32: 0>} : vector<5x1xi32>
    %22 = vector.broadcast %7 : vector<1x256xi32> to vector<5x256xi32>
    %23 = vector.broadcast %21 : vector<5x1xi32> to vector<5x256xi32>
    %24 = arith.cmpi eq, %22, %23 : vector<5x256xi32>
    %25 = arith.extui %24 : vector<5x256xi1> to vector<5x256xi32>
    %26 = arith.sitofp %25 : vector<5x256xi32> to vector<5x256xf32>
    %c0_10 = arith.constant 0 : index
    %c0_11 = arith.constant 0 : index
    %27 = vector.load %arg9[%c0_10, %c0_11] : memref<5x256xf32, #tpu.memory_space<vmem>>, vector<5x256xf32>
    %28 = arith.mulf %20, %26 : vector<5x256xf32>
    %29 = arith.addf %27, %28 : vector<5x256xf32>
    %c0_12 = arith.constant 0 : index
    %c0_13 = arith.constant 0 : index
    %30 = vector.load %arg9[%c0_12, %c0_13] : memref<5x256xf32, #tpu.memory_space<vmem>>, vector<5x256xf32>
    tpu.vector_store %arg9[%c0_12, %c0_13], %29 {strides = array<i32>} : memref<5x256xf32, #tpu.memory_space<vmem>>, vector<5x256xf32>,
    %c0_14 = arith.constant 0 : index
    %c0_15 = arith.constant 0 : index
    %31 = vector.load %arg10[%c0_14, %c0_15] : memref<5x256xf32, #tpu.memory_space<vmem>>, vector<5x256xf32>
    %32 = arith.mulf %20, %20 : vector<5x256xf32>
    %33 = arith.addf %31, %32 : vector<5x256xf32>
    %c0_16 = arith.constant 0 : index
    %c0_17 = arith.constant 0 : index
    %34 = vector.load %arg10[%c0_16, %c0_17] : memref<5x256xf32, #tpu.memory_space<vmem>>, vector<5x256xf32>
    tpu.vector_store %arg10[%c0_16, %c0_17], %33 {strides = array<i32>} : memref<5x256xf32, #tpu.memory_space<vmem>>, vector<5x256xf32>,
    %c0_18 = arith.constant 0 : index
    %c0_19 = arith.constant 0 : index
    %35 = vector.load %arg11[%c0_18, %c0_19] : memref<5x256xf32, #tpu.memory_space<vmem>>, vector<5x256xf32>
    %36 = arith.addf %35, %26 : vector<5x256xf32>
    %c0_20 = arith.constant 0 : index
    %c0_21 = arith.constant 0 : index
    %37 = vector.load %arg11[%c0_20, %c0_21] : memref<5x256xf32, #tpu.memory_space<vmem>>, vector<5x256xf32>
    tpu.vector_store %arg11[%c0_20, %c0_21], %36 {strides = array<i32>} : memref<5x256xf32, #tpu.memory_space<vmem>>, vector<5x256xf32>,
    %c0_22 = arith.constant 0 : index
    %c0_23 = arith.constant 0 : index
    %38 = vector.load %arg12[%c0_22, %c0_23] : memref<5x256xf32, #tpu.memory_space<vmem>>, vector<5x256xf32>
    %39 = arith.subf %20, %26 : vector<5x256xf32>
    %40 = math.absf %39 : vector<5x256xf32>
    %41 = vector.broadcast %10 : vector<1x256xf32> to vector<5x256xf32>
    %42 = arith.mulf %41, %40 : vector<5x256xf32>
    %43 = arith.addf %38, %42 : vector<5x256xf32>
    %c0_24 = arith.constant 0 : index
    %c0_25 = arith.constant 0 : index
    %44 = vector.load %arg12[%c0_24, %c0_25] : memref<5x256xf32, #tpu.memory_space<vmem>>, vector<5x256xf32>
    tpu.vector_store %arg12[%c0_24, %c0_25], %43 {strides = array<i32>} : memref<5x256xf32, #tpu.memory_space<vmem>>, vector<5x256xf32>,
    %c0_i32_26 = arith.constant 0 : i32
    %45 = arith.cmpi eq, %arg1, %c0_i32_26 : i32
    %46 = arith.extui %45 : i1 to i32
    %c0_i32_27 = arith.constant 0 : i32
    %47 = arith.cmpi ne, %46, %c0_i32_27 : i32
    scf.if %47 {
      %c0_28 = arith.constant 0 : index
      %c0_29 = arith.constant 0 : index
      %48 = vector.load %arg9[%c0_28, %c0_29] : memref<5x256xf32, #tpu.memory_space<vmem>>, vector<5x256xf32>
      %cst_30 = arith.constant dense<0.000000e+00> : vector<5xf32>
      %49 = vector.multi_reduction <add>, %48, %cst_30 [1] : vector<5x256xf32> to vector<5xf32>
      %50 = vector.shape_cast %49 : vector<5xf32> to vector<5x1xf32>
      %51 = vector.shape_cast %50 : vector<5x1xf32> to vector<1x5x1xf32>
      %c0_31 = arith.constant 0 : index
      %c0_32 = arith.constant 0 : index
      %c0_33 = arith.constant 0 : index
      %52 = vector.load %arg5[%c0_31, %c0_32, %c0_33] : memref<1x5x1xf32, #tpu.memory_space<vmem>>, vector<1x5x1xf32>
      tpu.vector_store %arg5[%c0_31, %c0_32, %c0_33], %51 {strides = array<i32>} : memref<1x5x1xf32, #tpu.memory_space<vmem>>, vector<1x5x1xf32>,
      %c0_34 = arith.constant 0 : index
      %c0_35 = arith.constant 0 : index
      %53 = vector.load %arg10[%c0_34, %c0_35] : memref<5x256xf32, #tpu.memory_space<vmem>>, vector<5x256xf32>
      %cst_36 = arith.constant dense<0.000000e+00> : vector<5xf32>
      %54 = vector.multi_reduction <add>, %53, %cst_36 [1] : vector<5x256xf32> to vector<5xf32>
      %55 = vector.shape_cast %54 : vector<5xf32> to vector<5x1xf32>
      %56 = vector.shape_cast %55 : vector<5x1xf32> to vector<1x5x1xf32>
      %c0_37 = arith.constant 0 : index
      %c0_38 = arith.constant 0 : index
      %c0_39 = arith.constant 0 : index
      %57 = vector.load %arg6[%c0_37, %c0_38, %c0_39] : memref<1x5x1xf32, #tpu.memory_space<vmem>>, vector<1x5x1xf32>
      tpu.vector_store %arg6[%c0_37, %c0_38, %c0_39], %56 {strides = array<i32>} : memref<1x5x1xf32, #tpu.memory_space<vmem>>, vector<1x5x1xf32>,
      %c0_40 = arith.constant 0 : index
      %c0_41 = arith.constant 0 : index
      %58 = vector.load %arg11[%c0_40, %c0_41] : memref<5x256xf32, #tpu.memory_space<vmem>>, vector<5x256xf32>
      %cst_42 = arith.constant dense<0.000000e+00> : vector<5xf32>
      %59 = vector.multi_reduction <add>, %58, %cst_42 [1] : vector<5x256xf32> to vector<5xf32>
      %60 = vector.shape_cast %59 : vector<5xf32> to vector<5x1xf32>
      %61 = vector.shape_cast %60 : vector<5x1xf32> to vector<1x5x1xf32>
      %c0_43 = arith.constant 0 : index
      %c0_44 = arith.constant 0 : index
      %c0_45 = arith.constant 0 : index
      %62 = vector.load %arg7[%c0_43, %c0_44, %c0_45] : memref<1x5x1xf32, #tpu.memory_space<vmem>>, vector<1x5x1xf32>
      tpu.vector_store %arg7[%c0_43, %c0_44, %c0_45], %61 {strides = array<i32>} : memref<1x5x1xf32, #tpu.memory_space<vmem>>, vector<1x5x1xf32>,
      %c0_46 = arith.constant 0 : index
      %c0_47 = arith.constant 0 : index
      %63 = vector.load %arg12[%c0_46, %c0_47] : memref<5x256xf32, #tpu.memory_space<vmem>>, vector<5x256xf32>
      %cst_48 = arith.constant dense<0.000000e+00> : vector<5xf32>
      %64 = vector.multi_reduction <add>, %63, %cst_48 [1] : vector<5x256xf32> to vector<5xf32>
      %65 = vector.shape_cast %64 : vector<5xf32> to vector<5x1xf32>
      %66 = vector.shape_cast %65 : vector<5x1xf32> to vector<1x5x1xf32>
      %c0_49 = arith.constant 0 : index
      %c0_50 = arith.constant 0 : index
      %c0_51 = arith.constant 0 : index
      %67 = vector.load %arg8[%c0_49, %c0_50, %c0_51] : memref<1x5x1xf32, #tpu.memory_space<vmem>>, vector<1x5x1xf32>
      tpu.vector_store %arg8[%c0_49, %c0_50, %c0_51], %66 {strides = array<i32>} : memref<1x5x1xf32, #tpu.memory_space<vmem>>, vector<1x5x1xf32>,
    } else {
    }
    return
  }
  func.func @transform_0(%arg0: i32, %arg1: i32) -> (i32, i32, i32) {
    %c0_i32 = arith.constant 0 : i32
    %c0_i32_0 = arith.constant 0 : i32
    return %arg0, %c0_i32, %arg1 : i32, i32, i32
  }
  func.func @transform_1(%arg0: i32, %arg1: i32) -> (i32, i32, i32) {
    %c0_i32 = arith.constant 0 : i32
    %c0_i32_0 = arith.constant 0 : i32
    return %arg0, %c0_i32, %arg1 : i32, i32, i32
  }
  func.func @transform_2(%arg0: i32, %arg1: i32) -> (i32, i32, i32) {
    %c0_i32 = arith.constant 0 : i32
    %c0_i32_0 = arith.constant 0 : i32
    return %arg0, %c0_i32, %arg1 : i32, i32, i32
  }
  func.func @transform_3(%arg0: i32, %arg1: i32) -> (i32, i32, i32) {
    %c0_i32 = arith.constant 0 : i32
    %c0_i32_0 = arith.constant 0 : i32
    %c0_i32_1 = arith.constant 0 : i32
    return %arg0, %c0_i32, %c0_i32_0 : i32, i32, i32
  }
  func.func @transform_4(%arg0: i32, %arg1: i32) -> (i32, i32, i32) {
    %c0_i32 = arith.constant 0 : i32
    %c0_i32_0 = arith.constant 0 : i32
    %c0_i32_1 = arith.constant 0 : i32
    return %arg0, %c0_i32, %c0_i32_0 : i32, i32, i32
  }
  func.func @transform_5(%arg0: i32, %arg1: i32) -> (i32, i32, i32) {
    %c0_i32 = arith.constant 0 : i32
    %c0_i32_0 = arith.constant 0 : i32
    %c0_i32_1 = arith.constant 0 : i32
    return %arg0, %c0_i32, %c0_i32_0 : i32, i32, i32
  }
  func.func @transform_6(%arg0: i32, %arg1: i32) -> (i32, i32, i32) {
    %c0_i32 = arith.constant 0 : i32
    %c0_i32_0 = arith.constant 0 : i32
    %c0_i32_1 = arith.constant 0 : i32
    return %arg0, %c0_i32, %c0_i32_0 : i32, i32, i32
  }
}

</mosaic_0001>

<llo_original>
// kernel: dice_ct_loss.1
$region0: #{dice_ct_loss.1}
  #allocation0 [shape = 'u32[]', space=smem, size = 0x4, offset = 0x4, fixed_abs, tag = 'smem constant byte address 0x4 - core index']
  #allocation1 [shape = 'u32[144,128]{1,0:T(1,128)}', space=vmem, size = 0x12000, scoped, tag = 'internal scratch']
  #allocation2 [shape = 'f32[5,256]{1,0:T(8,128)}', space=vmem, size = 0x2000, scoped, tag = 'scratch operand']
  #allocation3 [shape = 'f32[5,256]{1,0:T(8,128)}', space=vmem, size = 0x2000, scoped, tag = 'scratch operand']
  #allocation4 [shape = 'f32[5,256]{1,0:T(8,128)}', space=vmem, size = 0x2000, scoped, tag = 'scratch operand']
  #allocation5 [shape = 'f32[5,256]{1,0:T(8,128)}', space=vmem, size = 0x2000, scoped, tag = 'scratch operand']
  %s0 = inlined_call_operand.vmem [shape: f32[2,5,256], index: 0, kind: input, shape index: {}]
  %s1 = inlined_call_operand.vmem [shape: s8[2,1,256], index: 1, kind: input, shape index: {}]
  %s2 = inlined_call_operand.vmem [shape: f32[2,1,256], index: 2, kind: input, shape index: {}]
  %s3 = inlined_call_operand.vmem [shape: f32[2,5,1], index: 3, kind: output, shape index: {0}]
  %s4 = inlined_call_operand.vmem [shape: f32[2,5,1], index: 4, kind: output, shape index: {1}]
  %s5 = inlined_call_operand.vmem [shape: f32[2,5,1], index: 5, kind: output, shape index: {2}]
  %s6 = inlined_call_operand.vmem [shape: f32[2,5,1], index: 6, kind: output, shape index: {3}]
  %7 = xla_tuple %s3, %s4, %s5, %s6
  %s8 = sld [smem:[#allocation0]]
  $region77: #{dice_ct_loss.1} parent=0
    _
  %s10 = ssub.s32 1, %s8
  %s11 = scalar_select 0, %s10, %s8
  loop: start=0, step=1, limit=4
  $region2: #{dice_ct_loss.1} parent=0 // loop_pre_header
    _
  $region3: #{dice_ct_loss.1} parent=0 // loop_header
    %s13 = sphi 0, %s17
    %p14 = scmp.ge.s32.totalorder %s13, 4
    %s20 = sphi 0, %s32
    %s21 = sphi 0, %s28
    %s22 = sphi 0, %s20
    %s23 = sphi 0, %s21
    %s24 = sphi 0, %s22
    %s25 = sphi 0, %s23
    %s37 = sphi 0, %s39
    %s40 = sphi 0, %s37
    %s41 = sphi 0, %s40
    %s57 = sphi 0, %s41
    %s65 = sphi 0, %s67
    %s68 = sphi 0, %s65
    %s69 = sphi 0, %s68
    %s85 = sphi 0, %s69
    %s93 = sphi 0, %s95
    %s96 = sphi 0, %s93
    %s97 = sphi 0, %s96
    %s113 = sphi 0, %s97
    %s119 = sphi 0, %s121
    %s122 = sphi 0, %s119
    %s123 = sphi 0, %s122
    %s139 = sphi 0, %s123
    %s145 = sphi 0, %s147
    %s148 = sphi 0, %s145
    %s149 = sphi 0, %s148
    %s165 = sphi 0, %s149
    %s171 = sphi 0, %s173
    %s174 = sphi 0, %s171
    %s175 = sphi 0, %s174
    %s191 = sphi 0, %s175
    %s197 = sphi 0, %s199
    %s200 = sphi 0, %s197
    %s201 = sphi 0, %s200
    %s217 = sphi 0, %s201
  $region4: #{dice_ct_loss.1} parent=0 // loop_header_branch
    %16 = sbr.rel (%p14) target = $region8
  $region5: #{dice_ct_loss.1} parent=0 // loop_body
    %s18 = ssub.s32 %s13, 1
    %s19 = ssub.s32 %s13, 2
    %s26 = sadd.s32 1, %s21
    %p27 = scmp.ge.s32.totalorder %s26, 1
    %s28 = scalar_select %p27, 0, %s26
    %s29 = sadd.s32 1, %s20
    %s30 = scalar_select %p27, %s29, %s20
    %p31 = scmp.ge.s32.totalorder %s30, 2
    %s32 = scalar_select %p31, 0, %s30
    %s33 = ssub.s32 %s20, %s32
    %s34 = ssub.s32 %s21, %s28
    %s35 = sor.u32 %s33, %s34
    %p36 = scmp.eq.s32.totalorder %s35, 0
    %s38 = sadd.s32 %s37, 1
    %s39 = scalar_select %p36, %s37, %s38
    %p42 = pneg %p36
    %p43 = scmp.eq.s32.totalorder %s13, 1
    %p44 = por %p42, %p43
    %p45 = scmp.ne.s32.totalorder %s37, %s40
    %p46 = scmp.eq.s32.totalorder %s13, 0
    %p47 = por %p45, %p46
    %p48 = scmp.ne.s32.totalorder %s37, %s40
    %p49 = scmp.eq.s32.totalorder %s18, 1
    %p50 = por %p48, %p49
    %p51 = scmp.ne.s32.totalorder %s40, %s41
    %p52 = scmp.eq.s32.totalorder %s18, 0
    %p53 = por %p51, %p52
    %p54 = scmp.ne.s32.totalorder %s40, %s41
    %p55 = scmp.eq.s32.totalorder %s19, 1
    %p56 = por %p54, %p55
    %p58 = scmp.ne.s32.totalorder %s41, %s57
    %p59 = scmp.eq.s32.totalorder %s19, 0
    %p60 = por %p58, %p59
    %s61 = ssub.s32 %s20, %s32
    %s62 = ssub.s32 %s21, %s28
    %s63 = sor.u32 %s61, %s62
    %p64 = scmp.eq.s32.totalorder %s63, 0
    %s66 = sadd.s32 %s65, 1
    %s67 = scalar_select %p64, %s65, %s66
    %p70 = pneg %p64
    %p71 = scmp.eq.s32.totalorder %s13, 1
    %p72 = por %p70, %p71
    %p73 = scmp.ne.s32.totalorder %s65, %s68
    %p74 = scmp.eq.s32.totalorder %s13, 0
    %p75 = por %p73, %p74
    %p76 = scmp.ne.s32.totalorder %s65, %s68
    %p77 = scmp.eq.s32.totalorder %s18, 1
    %p78 = por %p76, %p77
    %p79 = scmp.ne.s32.totalorder %s68, %s69
    %p80 = scmp.eq.s32.totalorder %s18, 0
    %p81 = por %p79, %p80
    %p82 = scmp.ne.s32.totalorder %s68, %s69
    %p83 = scmp.eq.s32.totalorder %s19, 1
    %p84 = por %p82, %p83
    %p86 = scmp.ne.s32.totalorder %s69, %s85
    %p87 = scmp.eq.s32.totalorder %s19, 0
    %p88 = por %p86, %p87
    %s89 = ssub.s32 %s20, %s32
    %s90 = ssub.s32 %s21, %s28
    %s91 = sor.u32 %s89, %s90
    %p92 = scmp.eq.s32.totalorder %s91, 0
    %s94 = sadd.s32 %s93, 1
    %s95 = scalar_select %p92, %s93, %s94
    %p98 = pneg %p92
    %p99 = scmp.eq.s32.totalorder %s13, 1
    %p100 = por %p98, %p99
    %p101 = scmp.ne.s32.totalorder %s93, %s96
    %p102 = scmp.eq.s32.totalorder %s13, 0
    %p103 = por %p101, %p102
    %p104 = scmp.ne.s32.totalorder %s93, %s96
    %p105 = scmp.eq.s32.totalorder %s18, 1
    %p106 = por %p104, %p105
    %p107 = scmp.ne.s32.totalorder %s96, %s97
    %p108 = scmp.eq.s32.totalorder %s18, 0
    %p109 = por %p107, %p108
    %p110 = scmp.ne.s32.totalorder %s96, %s97
    %p111 = scmp.eq.s32.totalorder %s19, 1
    %p112 = por %p110, %p111
    %p114 = scmp.ne.s32.totalorder %s97, %s113
    %p115 = scmp.eq.s32.totalorder %s19, 0
    %p116 = por %p114, %p115
    %s117 = ssub.s32 %s20, %s32
    %p118 = scmp.eq.s32.totalorder %s117, 0
    %s120 = sadd.s32 %s119, 1
    %s121 = scalar_select %p118, %s119, %s120
    %p124 = pneg %p118
    %p125 = scmp.eq.s32.totalorder %s13, 1
    %p126 = por %p124, %p125
    %p127 = scmp.ne.s32.totalorder %s119, %s122
    %p128 = scmp.eq.s32.totalorder %s13, 0
    %p129 = por %p127, %p128
    %p130 = scmp.ne.s32.totalorder %s119, %s122
    %p131 = scmp.eq.s32.totalorder %s18, 1
    %p132 = por %p130, %p131
    %p133 = scmp.ne.s32.totalorder %s122, %s123
    %p134 = scmp.eq.s32.totalorder %s18, 0
    %p135 = por %p133, %p134
    %p136 = scmp.ne.s32.totalorder %s122, %s123
    %p137 = scmp.eq.s32.totalorder %s19, 1
    %p138 = por %p136, %p137
    %p140 = scmp.ne.s32.totalorder %s123, %s139
    %p141 = scmp.eq.s32.totalorder %s19, 0
    %p142 = por %p140, %p141
    %s143 = ssub.s32 %s20, %s32
    %p144 = scmp.eq.s32.totalorder %s143, 0
    %s146 = sadd.s32 %s145, 1
    %s147 = scalar_select %p144, %s145, %s146
    %p150 = pneg %p144
    %p151 = scmp.eq.s32.totalorder %s13, 1
    %p152 = por %p150, %p151
    %p153 = scmp.ne.s32.totalorder %s145, %s148
    %p154 = scmp.eq.s32.totalorder %s13, 0
    %p155 = por %p153, %p154
    %p156 = scmp.ne.s32.totalorder %s145, %s148
    %p157 = scmp.eq.s32.totalorder %s18, 1
    %p158 = por %p156, %p157
    %p159 = scmp.ne.s32.totalorder %s148, %s149
    %p160 = scmp.eq.s32.totalorder %s18, 0
    %p161 = por %p159, %p160
    %p162 = scmp.ne.s32.totalorder %s148, %s149
    %p163 = scmp.eq.s32.totalorder %s19, 1
    %p164 = por %p162, %p163
    %p166 = scmp.ne.s32.totalorder %s149, %s165
    %p167 = scmp.eq.s32.totalorder %s19, 0
    %p168 = por %p166, %p167
    %s169 = ssub.s32 %s20, %s32
    %p170 = scmp.eq.s32.totalorder %s169, 0
    %s172 = sadd.s32 %s171, 1
    %s173 = scalar_select %p170, %s171, %s172
    %p176 = pneg %p170
    %p177 = scmp.eq.s32.totalorder %s13, 1
    %p178 = por %p176, %p177
    %p179 = scmp.ne.s32.totalorder %s171, %s174
    %p180 = scmp.eq.s32.totalorder %s13, 0
    %p181 = por %p179, %p180
    %p182 = scmp.ne.s32.totalorder %s171, %s174
    %p183 = scmp.eq.s32.totalorder %s18, 1
    %p184 = por %p182, %p183
    %p185 = scmp.ne.s32.totalorder %s174, %s175
    %p186 = scmp.eq.s32.totalorder %s18, 0
    %p187 = por %p185, %p186
    %p188 = scmp.ne.s32.totalorder %s174, %s175
    %p189 = scmp.eq.s32.totalorder %s19, 1
    %p190 = por %p188, %p189
    %p192 = scmp.ne.s32.totalorder %s175, %s191
    %p193 = scmp.eq.s32.totalorder %s19, 0
    %p194 = por %p192, %p193
    %s195 = ssub.s32 %s20, %s32
    %p196 = scmp.eq.s32.totalorder %s195, 0
    %s198 = sadd.s32 %s197, 1
    %s199 = scalar_select %p196, %s197, %s198
    %p202 = pneg %p196
    %p203 = scmp.eq.s32.totalorder %s13, 1
    %p204 = por %p202, %p203
    %p205 = scmp.ne.s32.totalorder %s197, %s200
    %p206 = scmp.eq.s32.totalorder %s13, 0
    %p207 = por %p205, %p206
    %p208 = scmp.ne.s32.totalorder %s197, %s200
    %p209 = scmp.eq.s32.totalorder %s18, 1
    %p210 = por %p208, %p209
    %p211 = scmp.ne.s32.totalorder %s200, %s201
    %p212 = scmp.eq.s32.totalorder %s18, 0
    %p213 = por %p211, %p212
    %p214 = scmp.ne.s32.totalorder %s200, %s201
    %p215 = scmp.eq.s32.totalorder %s19, 1
    %p216 = por %p214, %p215
    %p218 = scmp.ne.s32.totalorder %s201, %s217
    %p219 = scmp.eq.s32.totalorder %s19, 0
    %p220 = por %p218, %p219
    %p221 = scmp.le.s32.totalorder 1, %s13
    %p222 = scmp.lt.s32.totalorder %s13, 3
    %p223 = pnand %p221, %p222
    %p224 = pneg %p223
    // Predicated region
    $region9: #{dice_ct_loss.1} parent=5 // pred_check
      _
    $region10: #{dice_ct_loss.1} parent=5 // pred_check_branch
      %226 = sbr.rel (%p223) target = $region12
    $region11: #{dice_ct_loss.1} parent=5 // pred_region
      %s227 = ssub.s32 %s13, 1
    $region12: #{dice_ct_loss.1} parent=5 // pred_fallthru
      _
    %p228 = scmp.lt.s32.totalorder %s13, 2
    // Predicated region
    $region13: #{dice_ct_loss.1} parent=5 // pred_check
      %p229 = pneg %p228
    $region14: #{dice_ct_loss.1} parent=5 // pred_check_branch
      %231 = sbr.rel (%p229) target = $region16
    $region15: #{dice_ct_loss.1} parent=5 // pred_region
      // Predicated region
      $region17: #{dice_ct_loss.1} parent=15 // pred_check
        %p232 = pneg %p47
      $region18: #{dice_ct_loss.1} parent=15 // pred_check_branch
        %234 = sbr.rel (%p232) target = $region20
      $region19: #{dice_ct_loss.1} parent=15 // pred_region
        %s235 = smul.u32 2, %s21
        %p236 = scmp.lt.s32.totalorder %s20, 1
        %s237 = scalar_select %p236, %s20, 1
        %p238 = scmp.lt.s32.totalorder %s235, 1
        %s239 = scalar_select %p238, %s235, 1
        %s240 = smul.addr %s237, 2
        %s241 = sadd.s32 %s239, %s240
        %s242 = smul.addr %s241, 8
        %s243 = scalar_lea.vmem %s0, %s242
        %s244 = smul.u32 2, %s21
      $region20: #{dice_ct_loss.1} parent=15 // pred_fallthru
        _
      // Predicated region
      $region21: #{dice_ct_loss.1} parent=15 // pred_check
        %p245 = pneg %p75
      $region22: #{dice_ct_loss.1} parent=15 // pred_check_branch
        %247 = sbr.rel (%p245) target = $region24
      $region23: #{dice_ct_loss.1} parent=15 // pred_region
        %s248 = smul.u32 2, %s21
        %p249 = scmp.lt.s32.totalorder %s20, 1
        %s250 = scalar_select %p249, %s20, 1
        %p251 = scmp.lt.s32.totalorder %s248, 1
        %s252 = scalar_select %p251, %s248, 1
        %s253 = smul.addr %s250, 2
        %s254 = sadd.s32 %s252, %s253
        %s255 = scalar_lea.vmem %s1, %s254
        %s256 = smul.u32 2, %s21
      $region24: #{dice_ct_loss.1} parent=15 // pred_fallthru
        _
      // Predicated region
      $region25: #{dice_ct_loss.1} parent=15 // pred_check
        %p257 = pneg %p103
      $region26: #{dice_ct_loss.1} parent=15 // pred_check_branch
        %259 = sbr.rel (%p257) target = $region28
      $region27: #{dice_ct_loss.1} parent=15 // pred_region
        %s260 = smul.u32 2, %s21
        %p261 = scmp.lt.s32.totalorder %s20, 1
        %s262 = scalar_select %p261, %s20, 1
        %p263 = scmp.lt.s32.totalorder %s260, 1
        %s264 = scalar_select %p263, %s260, 1
        %s265 = smul.addr %s262, 2
        %s266 = sadd.s32 %s264, %s265
        %s267 = scalar_lea.vmem %s2, %s266
        %s268 = smul.u32 2, %s21
      $region28: #{dice_ct_loss.1} parent=15 // pred_fallthru
        _
    $region16: #{dice_ct_loss.1} parent=5 // pred_fallthru
      _
    %p269 = scmp.le.s32.totalorder 1, %s13
    %p270 = scmp.lt.s32.totalorder %s13, 3
    %p271 = pnand %p269, %p270
    %p272 = pneg %p271
    // Predicated region
    $region29: #{dice_ct_loss.1} parent=5 // pred_check
      _
    $region30: #{dice_ct_loss.1} parent=5 // pred_check_branch
      %274 = sbr.rel (%p271) target = $region32
    $region31: #{dice_ct_loss.1} parent=5 // pred_region
      %s275 = ssub.s32 %s13, 1
      %s276 = smul.u32 2, %s23
      %p277 = scmp.lt.s32.totalorder %s22, 1
      %s278 = scalar_select %p277, %s22, 1
      %p279 = scmp.lt.s32.totalorder %s276, 1
      %s280 = scalar_select %p279, %s276, 1
      %s281 = smul.addr %s278, 2
      %s282 = sadd.s32 %s280, %s281
      %s283 = smul.addr %s282, 8
      %s284 = scalar_lea.vmem %s0, %s283
      %p285 = pneg %p53
      %p286 = pneg %p50
      %s287 = smul.u32 2, %s23
      %p288 = scmp.lt.s32.totalorder %s22, 1
      %s289 = scalar_select %p288, %s22, 1
      %p290 = scmp.lt.s32.totalorder %s287, 1
      %s291 = scalar_select %p290, %s287, 1
      %s292 = smul.addr %s289, 2
      %s293 = sadd.s32 %s291, %s292
      %s294 = scalar_lea.vmem %s1, %s293
      %p295 = pneg %p81
      %p296 = pneg %p78
      %s297 = smul.u32 2, %s23
      %p298 = scmp.lt.s32.totalorder %s22, 1
      %s299 = scalar_select %p298, %s22, 1
      %p300 = scmp.lt.s32.totalorder %s297, 1
      %s301 = scalar_select %p300, %s297, 1
      %s302 = smul.addr %s299, 2
      %s303 = sadd.s32 %s301, %s302
      %s304 = scalar_lea.vmem %s2, %s303
      %p305 = pneg %p109
      %p306 = pneg %p106
      %p307 = pneg %p135
      %p308 = pneg %p132
      %p309 = scmp.lt.s32.totalorder %s22, 1
      %s310 = scalar_select %p309, %s22, 1
      %s311 = smul.addr %s310, 8
      %s312 = scalar_lea.vmem %s3, %s311
      %p313 = pneg %p161
      %p314 = pneg %p158
      %p315 = scmp.lt.s32.totalorder %s22, 1
      %s316 = scalar_select %p315, %s22, 1
      %s317 = smul.addr %s316, 8
      %s318 = scalar_lea.vmem %s4, %s317
      %p319 = pneg %p187
      %p320 = pneg %p184
      %p321 = scmp.lt.s32.totalorder %s22, 1
      %s322 = scalar_select %p321, %s22, 1
      %s323 = smul.addr %s322, 8
      %s324 = scalar_lea.vmem %s5, %s323
      %p325 = pneg %p213
      %p326 = pneg %p210
      %p327 = scmp.lt.s32.totalorder %s22, 1
      %s328 = scalar_select %p327, %s22, 1
      %s329 = smul.addr %s328, 8
      %s330 = scalar_lea.vmem %s6, %s329
      %s331 = smul.u32 2, %s23
      %p332 = scmp.lt.s32.totalorder %s22, 1
      %s333 = scalar_select %p332, %s22, 1
      %p334 = scmp.lt.s32.totalorder %s331, 1
      %s335 = scalar_select %p334, %s331, 1
      %s336 = smul.addr %s333, 2
      %s337 = sadd.s32 %s335, %s336
      %s338 = smul.addr %s337, 8
      %s339 = scalar_lea.vmem %s0, %s338
      %s340 = smul.u32 2, %s23
      %s341 = smul.u32 2, %s23
      %p342 = scmp.lt.s32.totalorder %s22, 1
      %s343 = scalar_select %p342, %s22, 1
      %p344 = scmp.lt.s32.totalorder %s341, 1
      %s345 = scalar_select %p344, %s341, 1
      %s346 = smul.addr %s343, 2
      %s347 = sadd.s32 %s345, %s346
      %s348 = scalar_lea.vmem %s1, %s347
      %s349 = smul.u32 2, %s23
      %s350 = smul.u32 2, %s23
      %p351 = scmp.lt.s32.totalorder %s22, 1
      %s352 = scalar_select %p351, %s22, 1
      %p353 = scmp.lt.s32.totalorder %s350, 1
      %s354 = scalar_select %p353, %s350, 1
      %s355 = smul.addr %s352, 2
      %s356 = sadd.s32 %s354, %s355
      %s357 = scalar_lea.vmem %s2, %s356
      %s358 = smul.u32 2, %s23
      %p359 = scmp.lt.s32.totalorder %s22, 1
      %s360 = scalar_select %p359, %s22, 1
      %s361 = smul.addr %s360, 8
      %s362 = scalar_lea.vmem %s3, %s361
      %p363 = scmp.lt.s32.totalorder %s22, 1
      %s364 = scalar_select %p363, %s22, 1
      %s365 = smul.addr %s364, 8
      %s366 = scalar_lea.vmem %s4, %s365
      %p367 = scmp.lt.s32.totalorder %s22, 1
      %s368 = scalar_select %p367, %s22, 1
      %s369 = smul.addr %s368, 8
      %s370 = scalar_lea.vmem %s5, %s369
      %p371 = scmp.lt.s32.totalorder %s22, 1
      %s372 = scalar_select %p371, %s22, 1
      %s373 = smul.addr %s372, 8
      %s374 = scalar_lea.vmem %s6, %s373
      %p375 = scmp.eq.s32.totalorder %s23, 0
      // Predicated region
      $region33: #{dice_ct_loss.1} parent=31 // pred_check
        %p376 = pneg %p375
      $region34: #{dice_ct_loss.1} parent=31 // pred_check_branch
        %378 = sbr.rel (%p376) target = $region36
      $region35: #{dice_ct_loss.1} parent=31 // pred_region
        %379 = vst [vmem:[#allocation2] sm:$0x1f] 0.0
        %380 = vst [vmem:[#allocation2 + $0x8] sm:$0x1f] 0.0
        %381 = vst [vmem:[#allocation3] sm:$0x1f] 0.0
        %382 = vst [vmem:[#allocation3 + $0x8] sm:$0x1f] 0.0
        %383 = vst [vmem:[#allocation4] sm:$0x1f] 0.0
        %384 = vst [vmem:[#allocation4 + $0x8] sm:$0x1f] 0.0
        %385 = vst [vmem:[#allocation5] sm:$0x1f] 0.0
        %386 = vst [vmem:[#allocation5 + $0x8] sm:$0x1f] 0.0
      $region36: #{dice_ct_loss.1} parent=31 // pred_fallthru
        _
      %v387 = vld [vmem:[%s339] sm:$0x1f]
      %v388 = vld [vmem:[%s339 + $0x8] sm:$0x1f]
      %v389 = vld [vmem:[%s348] sm:$0x3]
      %v390 = vunpack.c.0.s8 %v389
      %v391 = vld [vmem:[%s357] sm:$0x3]
      %v392 = vand.u32 2147483647, %v391
      %vm393 = vcmask 1044480
      %v394 = vsel %vm393, %v387, -inf
      %v395 = vrot.slane %v394, 4
      %v396 = vmax.f32 %v394, %v395
      %v397 = vrot.slane %v396, 2
      %v398 = vmax.f32 %v396, %v397
      %v399 = vrot.slane %v398, 1
      %v400 = vmax.f32 %v398, %v399
      %v401 = vsel %vm393, %v388, -inf
      %v402 = vrot.slane %v401, 4
      %v403 = vmax.f32 %v401, %v402
      %v404 = vrot.slane %v403, 2
      %v405 = vmax.f32 %v403, %v404
      %v406 = vrot.slane %v405, 1
      %v407 = vmax.f32 %v405, %v406
      %v408 = vsub.f32 %v387, %v400
      %v409 = vsub.f32 %v388, %v407
      %v410 = vmul.f32 %v408, 1.442695
      %v411 = vpow.pop %v410
      %v412 = vmul.f32 %v409, 1.442695
      %v413 = vpow.pop %v412
      %v414 = vsel %vm393, %v411, 0.0
      %v415 = vrot.slane %v414, 4
      %v416 = vadd.f32 %v414, %v415
      %v417 = vrot.slane %v416, 2
      %v418 = vadd.f32 %v416, %v417
      %v419 = vrot.slane %v418, 1
      %v420 = vadd.f32 %v418, %v419
      %v421 = vsel %vm393, %v413, 0.0
      %v422 = vrot.slane %v421, 4
      %v423 = vadd.f32 %v421, %v422
      %v424 = vrot.slane %v423, 2
      %v425 = vadd.f32 %v423, %v424
      %v426 = vrot.slane %v425, 1
      %v427 = vadd.f32 %v425, %v426
      %v428 = vrcp.pop %v420
      %v429 = vrcp.pop %v427
      %v430 = vmul.f32 %v411, %v428
      %v431 = vmul.f32 %v413, %v429
      %v432 = vlaneseq
      %v433 = vshrl.u32 %v432, 7
      %v434 = vlaneseq
      %v435 = vshrl.u32 %v434, 7
      %v436 = vsub.s32 0, %v435
      %v437 = vrot.slane %v390, %v436
      %v438 = vlaneseq
      %v439 = vshrl.u32 %v438, 7
      %v440 = vsub.s32 4, %v439
      %v441 = vrot.slane %v390, %v440
      %v442 = vlaneseq
      %v443 = vshrl.u32 %v442, 7
      %v444 = vsub.s32 0, %v443
      %v445 = vrot.slane %v437, %v444
      %v446 = vlaneseq
      %v447 = vshrl.u32 %v446, 7
      %v448 = vsub.s32 0, %v447
      %v449 = vrot.slane %v441, %v448
      %vm450 = vcmp.eq.s32.totalorder %v445, %v433
      %vm451 = vcmp.eq.s32.totalorder %v449, %v433
      %v452 = vsel %vm450, 1, 0
      %v453 = vsel %vm451, 1, 0
      %v454 = vcvt.s32.f32 %v452
      %v455 = vcvt.s32.f32 %v453
      %v456 = vld [vmem:[#allocation2] sm:$0x1f]
      %v457 = vld [vmem:[#allocation2 + $0x8] sm:$0x1f]
      %v458 = vmul.f32 %v430, %v454
      %v459 = vmul.f32 %v431, %v455
      %v460 = vadd.f32 %v456, %v458
      %v461 = vadd.f32 %v457, %v459
      %462 = vst [vmem:[#allocation2] sm:$0x1f] %v460
      %463 = vst [vmem:[#allocation2 + $0x8] sm:$0x1f] %v461
      %v464 = vld [vmem:[#allocation3] sm:$0x1f]
      %v465 = vld [vmem:[#allocation3 + $0x8] sm:$0x1f]
      %v466 = vmul.f32 %v430, %v430
      %v467 = vmul.f32 %v431, %v431
      %v468 = vadd.f32 %v464, %v466
      %v469 = vadd.f32 %v465, %v467
      %470 = vst [vmem:[#allocation3] sm:$0x1f] %v468
      %471 = vst [vmem:[#allocation3 + $0x8] sm:$0x1f] %v469
      %v472 = vld [vmem:[#allocation4] sm:$0x1f]
      %v473 = vld [vmem:[#allocation4 + $0x8] sm:$0x1f]
      %v474 = vadd.f32 %v472, %v454
      %v475 = vadd.f32 %v473, %v455
      %476 = vst [vmem:[#allocation4] sm:$0x1f] %v474
      %477 = vst [vmem:[#allocation4 + $0x8] sm:$0x1f] %v475
      %v478 = vld [vmem:[#allocation5] sm:$0x1f]
      %v479 = vld [vmem:[#allocation5 + $0x8] sm:$0x1f]
      %v480 = vsub.f32 %v430, %v454
      %v481 = vsub.f32 %v431, %v455
      %v482 = vand.u32 2147483647, %v480
      %v483 = vand.u32 2147483647, %v481
      %v485 = vlaneseq
      %v486 = vshrl.u32 %v485, 7
      %v487 = vsub.s32 0, %v486
      %v488 = vrot.slane %v392, %v487
      %v489 = vlaneseq
      %v490 = vshrl.u32 %v489, 7
      %v491 = vsub.s32 1, %v490
      %v492 = vrot.slane %v392, %v491
      %v495 = vmul.f32 %v488, %v482
      %v496 = vmul.f32 %v492, %v483
      %v497 = vadd.f32 %v478, %v495
      %v498 = vadd.f32 %v479, %v496
      %499 = vst [vmem:[#allocation5] sm:$0x1f] %v497
      %500 = vst [vmem:[#allocation5 + $0x8] sm:$0x1f] %v498
      // Predicated region
      $region37: #{dice_ct_loss.1} parent=31 // pred_check
        %p501 = pneg %p375
      $region38: #{dice_ct_loss.1} parent=31 // pred_check_branch
        %503 = sbr.rel (%p501) target = $region40
      $region39: #{dice_ct_loss.1} parent=31 // pred_region
        %v504 = vld [vmem:[#allocation2] sm:$0x1f]
        %v505 = vld [vmem:[#allocation2 + $0x8] sm:$0x1f]
        %v506 = vsel %vm393, %v504, 0.0
        %v507 = vsel %vm393, %v505, 0.0
        %v508 = vadd.f32 %v506, %v507
        %509 = vadd.xlane.f32.xlu0 %v508
        %v510 = vpop.xlane.xlu0 %509
        %vm511 = vcmask 4096
        %512 = vst.msk [vmem:[%s362] sm:$0x1f] %vm511, %v510
        %v513 = vld [vmem:[#allocation3] sm:$0x1f]
        %v514 = vld [vmem:[#allocation3 + $0x8] sm:$0x1f]
        %v515 = vsel %vm393, %v513, 0.0
        %v516 = vsel %vm393, %v514, 0.0
        %v517 = vadd.f32 %v515, %v516
        %518 = vadd.xlane.f32.xlu0 %v517
        %v519 = vpop.xlane.xlu0 %518
        %520 = vst.msk [vmem:[%s366] sm:$0x1f] %vm511, %v519
        %v521 = vld [vmem:[#allocation4] sm:$0x1f]
        %v522 = vld [vmem:[#allocation4 + $0x8] sm:$0x1f]
        %v523 = vsel %vm393, %v521, 0.0
        %v524 = vsel %vm393, %v522, 0.0
        %v525 = vadd.f32 %v523, %v524
        %526 = vadd.xlane.f32.xlu0 %v525
        %v527 = vpop.xlane.xlu0 %526
        %528 = vst.msk [vmem:[%s370] sm:$0x1f] %vm511, %v527
        %v529 = vld [vmem:[#allocation5] sm:$0x1f]
        %v530 = vld [vmem:[#allocation5 + $0x8] sm:$0x1f]
        %v531 = vsel %vm393, %v529, 0.0
        %v532 = vsel %vm393, %v530, 0.0
        %v533 = vadd.f32 %v531, %v532
        %534 = vadd.xlane.f32.xlu0 %v533
        %v535 = vpop.xlane.xlu0 %534
        %536 = vst.msk [vmem:[%s374] sm:$0x1f] %vm511, %v535
      $region40: #{dice_ct_loss.1} parent=31 // pred_fallthru
        _
      %p537 = scmp.lt.s32.totalorder %s22, 1
      %s538 = scalar_select %p537, %s22, 1
      %s539 = smul.addr %s538, 8
      %s540 = scalar_lea.vmem %s3, %s539
      %p541 = scmp.lt.s32.totalorder %s22, 1
      %s542 = scalar_select %p541, %s22, 1
      %s543 = smul.addr %s542, 8
      %s544 = scalar_lea.vmem %s4, %s543
      %p545 = scmp.lt.s32.totalorder %s22, 1
      %s546 = scalar_select %p545, %s22, 1
      %s547 = smul.addr %s546, 8
      %s548 = scalar_lea.vmem %s5, %s547
      %p549 = scmp.lt.s32.totalorder %s22, 1
      %s550 = scalar_select %p549, %s22, 1
      %s551 = smul.addr %s550, 8
      %s552 = scalar_lea.vmem %s6, %s551
      // Predicated region
      $region41: #{dice_ct_loss.1} parent=31 // pred_check
        %p553 = pneg %p132
      $region42: #{dice_ct_loss.1} parent=31 // pred_check_branch
        %555 = sbr.rel (%p553) target = $region44
      $region43: #{dice_ct_loss.1} parent=31 // pred_region
        _
      $region44: #{dice_ct_loss.1} parent=31 // pred_fallthru
        _
      // Predicated region
      $region45: #{dice_ct_loss.1} parent=31 // pred_check
        %p556 = pneg %p158
      $region46: #{dice_ct_loss.1} parent=31 // pred_check_branch
        %558 = sbr.rel (%p556) target = $region48
      $region47: #{dice_ct_loss.1} parent=31 // pred_region
        _
      $region48: #{dice_ct_loss.1} parent=31 // pred_fallthru
        _
      // Predicated region
      $region49: #{dice_ct_loss.1} parent=31 // pred_check
        %p559 = pneg %p184
      $region50: #{dice_ct_loss.1} parent=31 // pred_check_branch
        %561 = sbr.rel (%p559) target = $region52
      $region51: #{dice_ct_loss.1} parent=31 // pred_region
        _
      $region52: #{dice_ct_loss.1} parent=31 // pred_fallthru
        _
      // Predicated region
      $region53: #{dice_ct_loss.1} parent=31 // pred_check
        %p562 = pneg %p210
      $region54: #{dice_ct_loss.1} parent=31 // pred_check_branch
        %564 = sbr.rel (%p562) target = $region56
      $region55: #{dice_ct_loss.1} parent=31 // pred_region
        _
      $region56: #{dice_ct_loss.1} parent=31 // pred_fallthru
        _
    $region32: #{dice_ct_loss.1} parent=5 // pred_fallthru
      _
    %p565 = scmp.le.s32.totalorder 2, %s13
    // Predicated region
    $region57: #{dice_ct_loss.1} parent=5 // pred_check
      %p566 = pneg %p565
    $region58: #{dice_ct_loss.1} parent=5 // pred_check_branch
      %568 = sbr.rel (%p566) target = $region60
    $region59: #{dice_ct_loss.1} parent=5 // pred_region
      %s569 = ssub.s32 %s13, 2
      // Predicated region
      $region61: #{dice_ct_loss.1} parent=59 // pred_check
        %p570 = pneg %p138
      $region62: #{dice_ct_loss.1} parent=59 // pred_check_branch
        %572 = sbr.rel (%p570) target = $region64
      $region63: #{dice_ct_loss.1} parent=59 // pred_region
        %p573 = scmp.lt.s32.totalorder %s24, 1
        %s574 = scalar_select %p573, %s24, 1
        %s575 = smul.addr %s574, 8
        %s576 = scalar_lea.vmem %s3, %s575
      $region64: #{dice_ct_loss.1} parent=59 // pred_fallthru
        _
      // Predicated region
      $region65: #{dice_ct_loss.1} parent=59 // pred_check
        %p577 = pneg %p164
      $region66: #{dice_ct_loss.1} parent=59 // pred_check_branch
        %579 = sbr.rel (%p577) target = $region68
      $region67: #{dice_ct_loss.1} parent=59 // pred_region
        %p580 = scmp.lt.s32.totalorder %s24, 1
        %s581 = scalar_select %p580, %s24, 1
        %s582 = smul.addr %s581, 8
        %s583 = scalar_lea.vmem %s4, %s582
      $region68: #{dice_ct_loss.1} parent=59 // pred_fallthru
        _
      // Predicated region
      $region69: #{dice_ct_loss.1} parent=59 // pred_check
        %p584 = pneg %p190
      $region70: #{dice_ct_loss.1} parent=59 // pred_check_branch
        %586 = sbr.rel (%p584) target = $region72
      $region71: #{dice_ct_loss.1} parent=59 // pred_region
        %p587 = scmp.lt.s32.totalorder %s24, 1
        %s588 = scalar_select %p587, %s24, 1
        %s589 = smul.addr %s588, 8
        %s590 = scalar_lea.vmem %s5, %s589
      $region72: #{dice_ct_loss.1} parent=59 // pred_fallthru
        _
      // Predicated region
      $region73: #{dice_ct_loss.1} parent=59 // pred_check
        %p591 = pneg %p216
      $region74: #{dice_ct_loss.1} parent=59 // pred_check_branch
        %593 = sbr.rel (%p591) target = $region76
      $region75: #{dice_ct_loss.1} parent=59 // pred_region
        %p594 = scmp.lt.s32.totalorder %s24, 1
        %s595 = scalar_select %p594, %s24, 1
        %s596 = smul.addr %s595, 8
        %s597 = scalar_lea.vmem %s6, %s596
      $region76: #{dice_ct_loss.1} parent=59 // pred_fallthru
        _
    $region60: #{dice_ct_loss.1} parent=5 // pred_fallthru
      _
  $region6: #{dice_ct_loss.1} parent=0 // loop_footer
    %s17 = sadd.s32 1, %s13
  $region7: #{dice_ct_loss.1} parent=0 // loop_footer_branch
    %12 = sbr.rel target = $region3
  $region8: #{dice_ct_loss.1} parent=0 // loop_exit
    _

</llo_original>
